<compile_context>
chip_gen: v5e
topology: v5e:2x2
jax: 0.10.0
libtpu: 0.0.40
codegen_flags: <defaults>
</compile_context>

<pallas_src>
import jax
import jax.numpy as jnp
from jax.experimental import pallas as pl
from jax.experimental.pallas import tpu as pltpu


def _round_up(v, m):
    return (v + m - 1) // m * m


# --------------------------------------------------------------------------- #
# Kernel 1: node stage (GraphConv -> ReLU -> GraphConv -> ReLU), feature-major
# --------------------------------------------------------------------------- #
def _node_stage_kernel(src_ref, dstc_ref, xt_ref, w1_ref, w2_ref, b_ref, h2_ref):
    f32, bf16 = jnp.float32, jnp.bfloat16
    N = xt_ref.shape[1]          # padded node count (lanes)
    E = src_ref.shape[1]         # padded edge count
    src = src_ref[...]           # (1, E) int32, -1 for padded edges
    dst = dstc_ref[...]          # (E, 1) int32, -1 for padded edges

    # One-hot edge matrices on the MXU instead of a serial scatter.
    # S^T[j, e] = [src[e] == j],  D[e, i] = [dst[e] == i]; padded edges (-1) -> 0.
    s_t = (jax.lax.broadcasted_iota(jnp.int32, (N, E), 0) == src).astype(bf16)   # (N, E)
    d = (jax.lax.broadcasted_iota(jnp.int32, (E, N), 1) == dst).astype(bf16)     # (E, N)
    # A^T[j, i] = #edges j -> i; reused by both conv layers: agg^T = h^T @ A^T.
    a_t = jnp.dot(s_t, d, preferred_element_type=f32).astype(bf16)               # (N, N)

    x_t = xt_ref[...]                                                            # (C, N) f32

    # ---- conv1 + ReLU : merged rel/root matmul on stacked [agg^T ; x^T] ----
    agg1 = jnp.dot(x_t.astype(bf16), a_t, preferred_element_type=f32)            # (C, N)
    z1 = jnp.concatenate([agg1, x_t], axis=0).astype(bf16)                       # (2C, N)
    h1 = jnp.maximum(
        jnp.dot(w1_ref[...], z1, preferred_element_type=f32) + b_ref[:, 0:1], 0.0)  # (H, N)

    # ---- conv2 + ReLU ----
    agg2 = jnp.dot(h1.astype(bf16), a_t, preferred_element_type=f32)             # (H, N)
    z2 = jnp.concatenate([agg2, h1], axis=0).astype(bf16)                        # (2H, N)
    h2 = jnp.maximum(
        jnp.dot(w2_ref[...], z2, preferred_element_type=f32) + b_ref[:, 1:2], 0.0)  # (H, N)

    h2_ref[...] = h2.astype(h2_ref.dtype)


# --------------------------------------------------------------------------- #
# Kernel 2: fused edge heads with in-kernel src/dst gather, tiled over edges
# --------------------------------------------------------------------------- #
def _edge_head_kernel(src_ref, dst_ref, h2t_ref, w_ref, b_ref, out_ref):
    f32, bf16 = jnp.float32, jnp.bfloat16
    H, N = h2t_ref.shape         # hidden, padded node count
    te = src_ref.shape[1]        # edge tile
    H2 = 2 * H

    h2t = h2t_ref[...]                                                           # (H, N) bf16

    # In-kernel gather via one-hot matmuls (fused; padded edges -> zero columns).
    iota = jax.lax.broadcasted_iota(jnp.int32, (N, te), 0)
    s_oh = (iota == src_ref[...]).astype(bf16)                                   # (N, te)
    d_oh = (iota == dst_ref[...]).astype(bf16)                                   # (N, te)
    src_f = jnp.dot(h2t, s_oh, preferred_element_type=f32)                       # (H, te)
    dst_f = jnp.dot(h2t, d_oh, preferred_element_type=f32)                       # (H, te)
    sd = jnp.concatenate([src_f, dst_f], axis=0).astype(bf16)                    # (2H, te)

    w1 = w_ref[0:H2, :]          # (2H, 2H)  [mean | var] hidden rows, [src | dst] cols
    wf = w_ref[H2:H2 + 2, :]     # (2, 2H)   block-diagonal final projection
    b1 = b_ref[0:H2, :]          # (2H, 1)
    bf_ = b_ref[H2:H2 + 2, :]    # (2, 1)

    h = jnp.maximum(jnp.dot(w1, sd, preferred_element_type=f32) + b1, 0.0)       # (2H, te)
    o = jnp.dot(wf, h.astype(bf16), preferred_element_type=f32) + bf_            # (2, te)

    # row 0 = mean, row 1 = var = exp(0.5 * logvar)  -> single lane-dense store.
    is_var_row = jax.lax.broadcasted_iota(jnp.int32, o.shape, 0) == 1
    out_ref[...] = jnp.where(is_var_row, jnp.exp(0.5 * o), o)


# --------------------------------------------------------------------------- #
# One-time parameter packing (hoisted out of the per-call wrapper)
# --------------------------------------------------------------------------- #
def prepare_params(params):
    f32, bf16 = jnp.float32, jnp.bfloat16
    H = params["w1_rel"].shape[1]

    # Conv weights, feature-major: h^T = W_comb @ [agg^T ; x^T] + b.
    w1c = jnp.concatenate([params["w1_rel"].T, params["w1_root"].T], axis=1).astype(bf16)  # (H, 2C)
    w2c = jnp.concatenate([params["w2_rel"].T, params["w2_root"].T], axis=1).astype(bf16)  # (H, 2H)
    b_conv = jnp.concatenate([params["b1_rel"].T, params["b2_rel"].T], axis=1).astype(f32)  # (H, 2)

    # Fused mean/logvar heads: one (2H, 2H) first layer + (2, 2H) block-diag final.
    w1_head = jnp.concatenate(
        [jnp.concatenate([params["wm1_src"].T, params["wm1_dst"].T], axis=1),
         jnp.concatenate([params["wv1_src"].T, params["wv1_dst"].T], axis=1)], axis=0)     # (2H, 2H)
    wf = jnp.zeros((2, 2 * H), f32)
    wf = wf.at[0, :H].set(params["wm2"][:, 0]).at[1, H:].set(params["wv2"][:, 0])
    w_head = jnp.concatenate([w1_head, wf], axis=0).astype(bf16)                           # (2H+2, 2H)
    b1 = jnp.concatenate([params["bm1"].T, params["bv1"].T], axis=0)                       # (2H, 1)
    bf_ = jnp.concatenate([params["bm2"].T, params["bv2"].T], axis=0)                      # (2, 1)
    b_head = jnp.concatenate([b1, bf_], axis=0).astype(f32)                                # (2H+2, 1)

    return {"w1c": w1c, "w2c": w2c, "b_conv": b_conv, "w_head": w_head, "b_head": b_head}


# --------------------------------------------------------------------------- #
# Forward wrapper
# --------------------------------------------------------------------------- #
def edge_value_predictor(x, edge_index, packed):
    """x: [N, C] f32, edge_index: [2, E] int32 (row 0 = source, row 1 = target)."""
    f32, bf16 = jnp.float32, jnp.bfloat16
    N, C = x.shape
    E = edge_index.shape[1]
    H = packed["w1c"].shape[0]

    # Lane-dense padding: nodes and edges padded to multiples of 128.
    n_pad = _round_up(N, 128)
    # Edge tile: large to amortize per-step overhead, >= 2 steps when E allows
    # so the "parallel" axis splits across v7x's two TensorCores.
    te = max(128, min(1024, pl.next_power_of_2(max(E // 2, 1))))
    e_pad = _round_up(E, te)

    ei = edge_index.astype(jnp.int32)
    src_row = jnp.pad(ei[0:1], ((0, 0), (0, e_pad - E)), constant_values=-1)   # (1, e_pad)
    dst_row = jnp.pad(ei[1:2], ((0, 0), (0, e_pad - E)), constant_values=-1)   # (1, e_pad)
    dst_col = dst_row.reshape(e_pad, 1)                                         # (e_pad, 1)
    x_t = jnp.pad(x.astype(f32).T, ((0, 0), (0, n_pad - N)))                    # (C, n_pad)

    # ---- node stage ------------------------------------------------------- #
    # TODO(synk): for very large N/E, tile the one-hot/A^T build over edge blocks
    # and the node lanes over a grid axis instead of holding (n_pad, n_pad) whole.
    h2t = pl.pallas_call(
        _node_stage_kernel,
        out_shape=jax.ShapeDtypeStruct((H, n_pad), bf16),
        grid=(1,),
        in_specs=[pl.BlockSpec((1, e_pad), lambda i: (0, 0)),
                  pl.BlockSpec((e_pad, 1), lambda i: (0, 0)),
                  pl.BlockSpec((C, n_pad), lambda i: (0, 0)),
                  pl.BlockSpec((H, 2 * C), lambda i: (0, 0)),
                  pl.BlockSpec((H, 2 * H), lambda i: (0, 0)),
                  pl.BlockSpec((H, 2), lambda i: (0, 0))],
        out_specs=pl.BlockSpec((H, n_pad), lambda i: (0, 0)),
        compiler_params=pltpu.CompilerParams(
            dimension_semantics=("arbitrary",),
            vmem_limit_bytes=32 * 1024 * 1024),
    )(src_row, dst_col, x_t, packed["w1c"], packed["w2c"], packed["b_conv"])

    # ---- fused edge heads (gather + MLPs), tiled over edge blocks ---------- #
    out_t = pl.pallas_call(
        _edge_head_kernel,
        out_shape=jax.ShapeDtypeStruct((2, e_pad), f32),
        grid=(e_pad // te,),
        in_specs=[pl.BlockSpec((1, te), lambda i: (0, i)),
                  pl.BlockSpec((1, te), lambda i: (0, i)),
                  pl.BlockSpec((H, n_pad), lambda i: (0, 0)),
                  pl.BlockSpec((2 * H + 2, 2 * H), lambda i: (0, 0)),
                  pl.BlockSpec((2 * H + 2, 1), lambda i: (0, 0))],
        out_specs=pl.BlockSpec((2, te), lambda i: (0, i)),
        compiler_params=pltpu.CompilerParams(
            dimension_semantics=("parallel",),
            vmem_limit_bytes=32 * 1024 * 1024),
    )(src_row, dst_row, h2t, packed["w_head"], packed["b_head"])

    mean = out_t[0, :E].reshape(E, 1)
    var = out_t[1, :E].reshape(E, 1)
    return mean, var


# --------------------------------------------------------------------------- #
# Pure-JAX f32 reference (for validation) and parameter init
# --------------------------------------------------------------------------- #
def reference_forward(x, edge_index, params):
    f32 = jnp.float32
    src, dst = edge_index[0], edge_index[1]
    N = x.shape[0]

    def conv(h, w_rel, w_root, b):
        agg = jnp.zeros((N, h.shape[1]), f32).at[dst].add(h[src])
        return agg @ w_rel + b + h @ w_root

    h1 = jax.nn.relu(conv(x, params["w1_rel"], params["w1_root"], params["b1_rel"]))
    h2 = jax.nn.relu(conv(h1, params["w2_rel"], params["w2_root"], params["b2_rel"]))
    s, d = h2[src], h2[dst]
    hm = jax.nn.relu(s @ params["wm1_src"] + d @ params["wm1_dst"] + params["bm1"])
    mean = hm @ params["wm2"] + params["bm2"]
    hv = jax.nn.relu(s @ params["wv1_src"] + d @ params["wv1_dst"] + params["bv1"])
    logvar = hv @ params["wv2"] + params["bv2"]
    return mean, jnp.exp(0.5 * logvar)


def init_params(key, in_channels, hidden_channels):
    """Deterministic synthetic parameter init (weights stored as [in, out])."""
    f32 = jnp.float32
    H = hidden_channels
    ks = jax.random.split(key, 12)
    s = 0.1
    params = {
        # GraphConv 1: lin_rel (with bias), lin_root (no bias)
        "w1_rel":  s * jax.random.normal(ks[0], (in_channels, H), f32),
        "w1_root": s * jax.random.normal(ks[1], (in_channels, H), f32),
        "b1_rel":  s * jax.random.normal(ks[2], (1, H), f32),
        # GraphConv 2
        "w2_rel":  s * jax.random.normal(ks[3], (H, H), f32),
        "w2_root": s * jax.random.normal(ks[4], (H, H), f32),
        "b2_rel":  s * jax.random.normal(ks[5], (1, H), f32),
        # edge_predictor_mean: Linear(2H -> H) split into src/dst halves, then Linear(H -> 1)
        "wm1_src": s * jax.random.normal(ks[6], (H, H), f32),
        "wm1_dst": s * jax.random.normal(ks[7], (H, H), f32),
        "bm1":     s * jax.random.normal(ks[8], (1, H), f32),
        "wm2":     s * jax.random.normal(ks[9], (H, 1), f32),
        "bm2":     jnp.zeros((1, 1), f32),
        # edge_predictor_logvar
        "wv1_src": s * jax.random.normal(ks[10], (H, H), f32),
        "wv1_dst": s * jax.random.normal(ks[11], (H, H), f32),
        "bv1":     jnp.zeros((1, H), f32),
        "wv2":     s * jax.random.normal(jax.random.fold_in(key, 99), (H, 1), f32),
        "bv2":     jnp.zeros((1, 1), f32),
    }
    return params


if __name__ == "__main__":
    key = jax.random.PRNGKey(0)

    N = 16            # number of graph nodes
    in_channels = 8   # input node feature dim
    hidden = 32       # hidden_channels
    # Deterministic ring graph (both directions): E = 2*N = 32 edges.
    fwd_src = jnp.arange(N, dtype=jnp.int32)
    fwd_dst = (fwd_src + 1) % N
    edge_index = jnp.stack([jnp.concatenate([fwd_src, fwd_dst]),
                            jnp.concatenate([fwd_dst, fwd_src])], axis=0)  # [2, 32]

    k_x, k_p = jax.random.split(key)
    x = jax.random.normal(k_x, (N, in_channels), jnp.float32)
    params = init_params(k_p, in_channels, hidden)

    packed = prepare_params(params)            # one-time weight packing (hoisted)
    fwd = jax.jit(edge_value_predictor)
    mean, var = fwd(x, edge_index, packed)
    jax.block_until_ready((mean, var))

    mean_ref, var_ref = reference_forward(x, edge_index, params)

    assert mean.shape == (edge_index.shape[1], 1)
    assert var.shape == (edge_index.shape[1], 1)
    assert bool(jnp.all(var > 0))  # var = exp(0.5*logvar) is strictly positive
    assert bool(jnp.allclose(mean, mean_ref, atol=2e-2, rtol=5e-2))
    assert bool(jnp.allclose(var, var_ref, atol=2e-2, rtol=5e-2))
    print("KERNEL_OK")
</pallas_src>

<mosaic_0001>
module attributes {stable_mosaic.version = 11 : i64} {
  func.func @_edge_head_kernel(%arg0: i32, %arg1: memref<1x128xi32, #tpu.memory_space<vmem>>, %arg2: memref<1x128xi32, #tpu.memory_space<vmem>>, %arg3: memref<32x128xbf16, #tpu.memory_space<vmem>>, %arg4: memref<66x64xbf16, #tpu.memory_space<vmem>>, %arg5: memref<66x1xf32, #tpu.memory_space<vmem>>, %arg6: memref<2x128xf32, #tpu.memory_space<vmem>>) attributes {dimension_semantics = [#tpu.dimension_semantics<parallel>], iteration_bounds = array<i64: 1>, scalar_prefetch = 0 : i64, scratch_operands = 0 : i64, tpu.core_type = #tpu.core_type<tc>, window_params = [{transform_indices = @transform_0, window_bounds = array<i64: 1, 128>}, {transform_indices = @transform_1, window_bounds = array<i64: 1, 128>}, {pipeline_mode = #tpu.pipeline_mode<synchronous>, transform_indices = @transform_2, window_bounds = array<i64: 32, 128>}, {pipeline_mode = #tpu.pipeline_mode<synchronous>, transform_indices = @transform_3, window_bounds = array<i64: 66, 64>}, {pipeline_mode = #tpu.pipeline_mode<synchronous>, transform_indices = @transform_4, window_bounds = array<i64: 66, 1>}, {transform_indices = @transform_5, window_bounds = array<i64: 2, 128>}]} {
    %c0 = arith.constant 0 : index
    %c0_0 = arith.constant 0 : index
    %0 = vector.load %arg3[%c0, %c0_0] : memref<32x128xbf16, #tpu.memory_space<vmem>>, vector<32x128xbf16>
    %1 = tpu.iota {dimensions = array<i32: 0>} : vector<128x128xi32>
    %c0_1 = arith.constant 0 : index
    %c0_2 = arith.constant 0 : index
    %2 = vector.load %arg1[%c0_1, %c0_2] : memref<1x128xi32, #tpu.memory_space<vmem>>, vector<1x128xi32>
    %3 = vector.broadcast %2 : vector<1x128xi32> to vector<128x128xi32>
    %4 = arith.cmpi eq, %1, %3 : vector<128x128xi32>
    %5 = arith.extui %4 : vector<128x128xi1> to vector<128x128xi32>
    %6 = arith.sitofp %5 : vector<128x128xi32> to vector<128x128xf32>
    %7 = arith.truncf %6 : vector<128x128xf32> to vector<128x128xbf16>
    %c0_3 = arith.constant 0 : index
    %c0_4 = arith.constant 0 : index
    %8 = vector.load %arg2[%c0_3, %c0_4] : memref<1x128xi32, #tpu.memory_space<vmem>>, vector<1x128xi32>
    %9 = vector.broadcast %8 : vector<1x128xi32> to vector<128x128xi32>
    %10 = arith.cmpi eq, %1, %9 : vector<128x128xi32>
    %11 = arith.extui %10 : vector<128x128xi1> to vector<128x128xi32>
    %12 = arith.sitofp %11 : vector<128x128xi32> to vector<128x128xf32>
    %13 = arith.truncf %12 : vector<128x128xf32> to vector<128x128xbf16>
    %cst = arith.constant dense<0.000000e+00> : vector<32x128xf32>
    %14 = tpu.matmul %0, %7, %cst {dimension_numbers = #tpu.dot_dimension_numbers<[1], [0], [0], [1], [0, 0, 1, 1], [], []>} : vector<32x128xbf16>, vector<128x128xbf16>, vector<32x128xf32> -> vector<32x128xf32>
    %cst_5 = arith.constant dense<0.000000e+00> : vector<32x128xf32>
    %15 = tpu.matmul %0, %13, %cst_5 {dimension_numbers = #tpu.dot_dimension_numbers<[1], [0], [0], [1], [0, 0, 1, 1], [], []>} : vector<32x128xbf16>, vector<128x128xbf16>, vector<32x128xf32> -> vector<32x128xf32>
    %16 = tpu.concatenate %14, %15 in 0 : vector<32x128xf32>, vector<32x128xf32> -> vector<64x128xf32>
    %17 = arith.truncf %16 : vector<64x128xf32> to vector<64x128xbf16>
    %c0_6 = arith.constant 0 : index
    %c0_7 = arith.constant 0 : index
    %18 = vector.load %arg4[%c0_6, %c0_7] : memref<66x64xbf16, #tpu.memory_space<vmem>>, vector<64x64xbf16>
    %c64 = arith.constant 64 : index
    %c0_8 = arith.constant 0 : index
    %19 = vector.load %arg4[%c64, %c0_8] : memref<66x64xbf16, #tpu.memory_space<vmem>>, vector<2x64xbf16>
    %c0_9 = arith.constant 0 : index
    %c0_10 = arith.constant 0 : index
    %20 = vector.load %arg5[%c0_9, %c0_10] : memref<66x1xf32, #tpu.memory_space<vmem>>, vector<64x1xf32>
    %c64_11 = arith.constant 64 : index
    %c0_12 = arith.constant 0 : index
    %21 = vector.load %arg5[%c64_11, %c0_12] : memref<66x1xf32, #tpu.memory_space<vmem>>, vector<2x1xf32>
    %cst_13 = arith.constant dense<0.000000e+00> : vector<64x128xf32>
    %22 = tpu.matmul %18, %17, %cst_13 {dimension_numbers = #tpu.dot_dimension_numbers<[1], [0], [0], [1], [0, 0, 1, 1], [], []>} : vector<64x64xbf16>, vector<64x128xbf16>, vector<64x128xf32> -> vector<64x128xf32>
    %23 = vector.broadcast %20 : vector<64x1xf32> to vector<64x128xf32>
    %24 = arith.addf %22, %23 : vector<64x128xf32>
    %cst_14 = arith.constant 0.000000e+00 : f32
    %25 = vector.broadcast %cst_14 : f32 to vector<64x128xf32>
    %26 = arith.maximumf %24, %25 : vector<64x128xf32>
    %27 = arith.truncf %26 : vector<64x128xf32> to vector<64x128xbf16>
    %cst_15 = arith.constant dense<0.000000e+00> : vector<2x128xf32>
    %28 = tpu.matmul %19, %27, %cst_15 {dimension_numbers = #tpu.dot_dimension_numbers<[1], [0], [0], [1], [0, 0, 1, 1], [], []>} : vector<2x64xbf16>, vector<64x128xbf16>, vector<2x128xf32> -> vector<2x128xf32>
    %29 = vector.broadcast %21 : vector<2x1xf32> to vector<2x128xf32>
    %30 = arith.addf %28, %29 : vector<2x128xf32>
    %31 = tpu.iota {dimensions = array<i32: 0>} : vector<2x128xi32>
    %c1_i32 = arith.constant 1 : i32
    %32 = vector.broadcast %c1_i32 : i32 to vector<2x128xi32>
    %33 = arith.cmpi eq, %31, %32 : vector<2x128xi32>
    %cst_16 = arith.constant 5.000000e-01 : f32
    %34 = vector.broadcast %cst_16 : f32 to vector<2x128xf32>
    %35 = arith.mulf %34, %30 : vector<2x128xf32>
    %36 = math.exp %35 : vector<2x128xf32>
    %37 = arith.select %33, %36, %30 : vector<2x128xi1>, vector<2x128xf32>
    %c0_17 = arith.constant 0 : index
    %c0_18 = arith.constant 0 : index
    %38 = vector.load %arg6[%c0_17, %c0_18] : memref<2x128xf32, #tpu.memory_space<vmem>>, vector<2x128xf32>
    tpu.vector_store %arg6[%c0_17, %c0_18], %37 {strides = array<i32>} : memref<2x128xf32, #tpu.memory_space<vmem>>, vector<2x128xf32>,
    return
  }
  func.func @transform_0(%arg0: i32) -> (i32, i32) {
    %c0_i32 = arith.constant 0 : i32
    %c0_i32_0 = arith.constant 0 : i32
    return %c0_i32, %arg0 : i32, i32
  }
  func.func @transform_1(%arg0: i32) -> (i32, i32) {
    %c0_i32 = arith.constant 0 : i32
    %c0_i32_0 = arith.constant 0 : i32
    return %c0_i32, %arg0 : i32, i32
  }
  func.func @transform_2(%arg0: i32) -> (i32, i32) {
    %c0_i32 = arith.constant 0 : i32
    %c0_i32_0 = arith.constant 0 : i32
    %c0_i32_1 = arith.constant 0 : i32
    return %c0_i32, %c0_i32_0 : i32, i32
  }
  func.func @transform_3(%arg0: i32) -> (i32, i32) {
    %c0_i32 = arith.constant 0 : i32
    %c0_i32_0 = arith.constant 0 : i32
    %c0_i32_1 = arith.constant 0 : i32
    return %c0_i32, %c0_i32_0 : i32, i32
  }
  func.func @transform_4(%arg0: i32) -> (i32, i32) {
    %c0_i32 = arith.constant 0 : i32
    %c0_i32_0 = arith.constant 0 : i32
    %c0_i32_1 = arith.constant 0 : i32
    return %c0_i32, %c0_i32_0 : i32, i32
  }
  func.func @transform_5(%arg0: i32) -> (i32, i32) {
    %c0_i32 = arith.constant 0 : i32
    %c0_i32_0 = arith.constant 0 : i32
    return %c0_i32, %arg0 : i32, i32
  }
}

module attributes {stable_mosaic.version = 11 : i64} {
  func.func @_node_stage_kernel(%arg0: i32, %arg1: memref<1x128xi32, #tpu.memory_space<vmem>>, %arg2: memref<128x1xi32, #tpu.memory_space<vmem>>, %arg3: memref<8x128xf32, #tpu.memory_space<vmem>>, %arg4: memref<32x16xbf16, #tpu.memory_space<vmem>>, %arg5: memref<32x64xbf16, #tpu.memory_space<vmem>>, %arg6: memref<32x2xf32, #tpu.memory_space<vmem>>, %arg7: memref<32x128xbf16, #tpu.memory_space<vmem>>) attributes {dimension_semantics = [#tpu.dimension_semantics<arbitrary>], iteration_bounds = array<i64: 1>, scalar_prefetch = 0 : i64, scratch_operands = 0 : i64, tpu.core_type = #tpu.core_type<tc>, window_params = [{pipeline_mode = #tpu.pipeline_mode<synchronous>, transform_indices = @transform_0, window_bounds = array<i64: 1, 128>}, {pipeline_mode = #tpu.pipeline_mode<synchronous>, transform_indices = @transform_1, window_bounds = array<i64: 128, 1>}, {pipeline_mode = #tpu.pipeline_mode<synchronous>, transform_indices = @transform_2, window_bounds = array<i64: 8, 128>}, {pipeline_mode = #tpu.pipeline_mode<synchronous>, transform_indices = @transform_3, window_bounds = array<i64: 32, 16>}, {pipeline_mode = #tpu.pipeline_mode<synchronous>, transform_indices = @transform_4, window_bounds = array<i64: 32, 64>}, {pipeline_mode = #tpu.pipeline_mode<synchronous>, transform_indices = @transform_5, window_bounds = array<i64: 32, 2>}, {pipeline_mode = #tpu.pipeline_mode<synchronous>, transform_indices = @transform_6, window_bounds = array<i64: 32, 128>}]} {
    %c0 = arith.constant 0 : index
    %c0_0 = arith.constant 0 : index
    %0 = vector.load %arg1[%c0, %c0_0] : memref<1x128xi32, #tpu.memory_space<vmem>>, vector<1x128xi32>
    %c0_1 = arith.constant 0 : index
    %c0_2 = arith.constant 0 : index
    %1 = vector.load %arg2[%c0_1, %c0_2] : memref<128x1xi32, #tpu.memory_space<vmem>>, vector<128x1xi32>
    %2 = tpu.iota {dimensions = array<i32: 0>} : vector<128x128xi32>
    %3 = vector.broadcast %0 : vector<1x128xi32> to vector<128x128xi32>
    %4 = arith.cmpi eq, %2, %3 : vector<128x128xi32>
    %5 = arith.extui %4 : vector<128x128xi1> to vector<128x128xi32>
    %6 = arith.sitofp %5 : vector<128x128xi32> to vector<128x128xf32>
    %7 = arith.truncf %6 : vector<128x128xf32> to vector<128x128xbf16>
    %8 = tpu.iota {dimensions = array<i32: 1>} : vector<128x128xi32>
    %9 = vector.broadcast %1 : vector<128x1xi32> to vector<128x128xi32>
    %10 = arith.cmpi eq, %8, %9 : vector<128x128xi32>
    %11 = arith.extui %10 : vector<128x128xi1> to vector<128x128xi32>
    %12 = arith.sitofp %11 : vector<128x128xi32> to vector<128x128xf32>
    %13 = arith.truncf %12 : vector<128x128xf32> to vector<128x128xbf16>
    %cst = arith.constant dense<0.000000e+00> : vector<128x128xf32>
    %14 = tpu.matmul %7, %13, %cst {dimension_numbers = #tpu.dot_dimension_numbers<[1], [0], [0], [1], [0, 0, 1, 1], [], []>} : vector<128x128xbf16>, vector<128x128xbf16>, vector<128x128xf32> -> vector<128x128xf32>
    %15 = arith.truncf %14 : vector<128x128xf32> to vector<128x128xbf16>
    %c0_3 = arith.constant 0 : index
    %c0_4 = arith.constant 0 : index
    %16 = vector.load %arg3[%c0_3, %c0_4] : memref<8x128xf32, #tpu.memory_space<vmem>>, vector<8x128xf32>
    %17 = arith.truncf %16 : vector<8x128xf32> to vector<8x128xbf16>
    %cst_5 = arith.constant dense<0.000000e+00> : vector<8x128xf32>
    %18 = tpu.matmul %17, %15, %cst_5 {dimension_numbers = #tpu.dot_dimension_numbers<[1], [0], [0], [1], [0, 0, 1, 1], [], []>} : vector<8x128xbf16>, vector<128x128xbf16>, vector<8x128xf32> -> vector<8x128xf32>
    %19 = tpu.concatenate %18, %16 in 0 : vector<8x128xf32>, vector<8x128xf32> -> vector<16x128xf32>
    %20 = arith.truncf %19 : vector<16x128xf32> to vector<16x128xbf16>
    %c0_6 = arith.constant 0 : index
    %c0_7 = arith.constant 0 : index
    %21 = vector.load %arg4[%c0_6, %c0_7] : memref<32x16xbf16, #tpu.memory_space<vmem>>, vector<32x16xbf16>
    %cst_8 = arith.constant dense<0.000000e+00> : vector<32x128xf32>
    %22 = tpu.matmul %21, %20, %cst_8 {dimension_numbers = #tpu.dot_dimension_numbers<[1], [0], [0], [1], [0, 0, 1, 1], [], []>} : vector<32x16xbf16>, vector<16x128xbf16>, vector<32x128xf32> -> vector<32x128xf32>
    %c0_9 = arith.constant 0 : index
    %c0_10 = arith.constant 0 : index
    %23 = vector.load %arg6[%c0_9, %c0_10] : memref<32x2xf32, #tpu.memory_space<vmem>>, vector<32x1xf32>
    %24 = vector.broadcast %23 : vector<32x1xf32> to vector<32x128xf32>
    %25 = arith.addf %22, %24 : vector<32x128xf32>
    %cst_11 = arith.constant 0.000000e+00 : f32
    %26 = vector.broadcast %cst_11 : f32 to vector<32x128xf32>
    %27 = arith.maximumf %25, %26 : vector<32x128xf32>
    %28 = arith.truncf %27 : vector<32x128xf32> to vector<32x128xbf16>
    %cst_12 = arith.constant dense<0.000000e+00> : vector<32x128xf32>
    %29 = tpu.matmul %28, %15, %cst_12 {dimension_numbers = #tpu.dot_dimension_numbers<[1], [0], [0], [1], [0, 0, 1, 1], [], []>} : vector<32x128xbf16>, vector<128x128xbf16>, vector<32x128xf32> -> vector<32x128xf32>
    %30 = tpu.concatenate %29, %27 in 0 : vector<32x128xf32>, vector<32x128xf32> -> vector<64x128xf32>
    %31 = arith.truncf %30 : vector<64x128xf32> to vector<64x128xbf16>
    %c0_13 = arith.constant 0 : index
    %c0_14 = arith.constant 0 : index
    %32 = vector.load %arg5[%c0_13, %c0_14] : memref<32x64xbf16, #tpu.memory_space<vmem>>, vector<32x64xbf16>
    %cst_15 = arith.constant dense<0.000000e+00> : vector<32x128xf32>
    %33 = tpu.matmul %32, %31, %cst_15 {dimension_numbers = #tpu.dot_dimension_numbers<[1], [0], [0], [1], [0, 0, 1, 1], [], []>} : vector<32x64xbf16>, vector<64x128xbf16>, vector<32x128xf32> -> vector<32x128xf32>
    %c0_16 = arith.constant 0 : index
    %c1 = arith.constant 1 : index
    %34 = vector.load %arg6[%c0_16, %c1] : memref<32x2xf32, #tpu.memory_space<vmem>>, vector<32x1xf32>
    %35 = vector.broadcast %34 : vector<32x1xf32> to vector<32x128xf32>
    %36 = arith.addf %33, %35 : vector<32x128xf32>
    %cst_17 = arith.constant 0.000000e+00 : f32
    %37 = vector.broadcast %cst_17 : f32 to vector<32x128xf32>
    %38 = arith.maximumf %36, %37 : vector<32x128xf32>
    %39 = arith.truncf %38 : vector<32x128xf32> to vector<32x128xbf16>
    %c0_18 = arith.constant 0 : index
    %c0_19 = arith.constant 0 : index
    %40 = vector.load %arg7[%c0_18, %c0_19] : memref<32x128xbf16, #tpu.memory_space<vmem>>, vector<32x128xbf16>
    tpu.vector_store %arg7[%c0_18, %c0_19], %39 {strides = array<i32>} : memref<32x128xbf16, #tpu.memory_space<vmem>>, vector<32x128xbf16>,
    return
  }
  func.func @transform_0(%arg0: i32) -> (i32, i32) {
    %c0_i32 = arith.constant 0 : i32
    %c0_i32_0 = arith.constant 0 : i32
    %c0_i32_1 = arith.constant 0 : i32
    return %c0_i32, %c0_i32_0 : i32, i32
  }
  func.func @transform_1(%arg0: i32) -> (i32, i32) {
    %c0_i32 = arith.constant 0 : i32
    %c0_i32_0 = arith.constant 0 : i32
    %c0_i32_1 = arith.constant 0 : i32
    return %c0_i32, %c0_i32_0 : i32, i32
  }
  func.func @transform_2(%arg0: i32) -> (i32, i32) {
    %c0_i32 = arith.constant 0 : i32
    %c0_i32_0 = arith.constant 0 : i32
    %c0_i32_1 = arith.constant 0 : i32
    return %c0_i32, %c0_i32_0 : i32, i32
  }
  func.func @transform_3(%arg0: i32) -> (i32, i32) {
    %c0_i32 = arith.constant 0 : i32
    %c0_i32_0 = arith.constant 0 : i32
    %c0_i32_1 = arith.constant 0 : i32
    return %c0_i32, %c0_i32_0 : i32, i32
  }
  func.func @transform_4(%arg0: i32) -> (i32, i32) {
    %c0_i32 = arith.constant 0 : i32
    %c0_i32_0 = arith.constant 0 : i32
    %c0_i32_1 = arith.constant 0 : i32
    return %c0_i32, %c0_i32_0 : i32, i32
  }
  func.func @transform_5(%arg0: i32) -> (i32, i32) {
    %c0_i32 = arith.constant 0 : i32
    %c0_i32_0 = arith.constant 0 : i32
    %c0_i32_1 = arith.constant 0 : i32
    return %c0_i32, %c0_i32_0 : i32, i32
  }
  func.func @transform_6(%arg0: i32) -> (i32, i32) {
    %c0_i32 = arith.constant 0 : i32
    %c0_i32_0 = arith.constant 0 : i32
    %c0_i32_1 = arith.constant 0 : i32
    return %c0_i32, %c0_i32_0 : i32, i32
  }
}

</mosaic_0001>

<llo_original>
// kernel: edge_value_predictor.3
$region0: #{edge_value_predictor.3}
  #allocation0 [shape = 'u32[]', space=smem, size = 0x4, offset = 0x4, fixed_abs, tag = 'smem constant byte address 0x4 - core index']
  #allocation1 [shape = 'u32[72,128]{1,0:T(1,128)}', space=vmem, size = 0x9000, scoped, tag = 'internal scratch']
  %s0 = inlined_call_operand.vmem [shape: s32[1,128], index: 0, kind: input, shape index: {}]
  %s1 = inlined_call_operand.vmem [shape: s32[1,128], index: 1, kind: input, shape index: {}]
  %s2 = inlined_call_operand.vmem [shape: bf16[32,128], index: 2, kind: input, shape index: {}]
  %s3 = inlined_call_operand.vmem [shape: bf16[66,64], index: 3, kind: input, shape index: {}]
  %s4 = inlined_call_operand.vmem [shape: f32[66,1], index: 4, kind: input, shape index: {}]
  %s5 = inlined_call_operand.vmem [shape: f32[2,128], index: 5, kind: output, shape index: {}]
  %s6 = sld [smem:[#allocation0]]
  $region30: #{edge_value_predictor.3} parent=0
    _
  %s8 = ssub.s32 1, %s6
  %s9 = scalar_select 0, %s8, %s6
  // Predicated region
  $region2: #{edge_value_predictor.3} parent=0 // pred_check
    _
  $region3: #{edge_value_predictor.3} parent=0 // pred_check_branch
    %11 = sbr.rel (0) target = $region5
  $region4: #{edge_value_predictor.3} parent=0 // pred_region
    _
  $region5: #{edge_value_predictor.3} parent=0 // pred_fallthru
    _
  // Predicated region
  $region6: #{edge_value_predictor.3} parent=0 // pred_check
    _
  $region7: #{edge_value_predictor.3} parent=0 // pred_check_branch
    %13 = sbr.rel (0) target = $region9
  $region8: #{edge_value_predictor.3} parent=0 // pred_region
    _
  $region9: #{edge_value_predictor.3} parent=0 // pred_fallthru
    _
  // Predicated region
  $region10: #{edge_value_predictor.3} parent=0 // pred_check
    _
  $region11: #{edge_value_predictor.3} parent=0 // pred_check_branch
    %15 = sbr.rel (0) target = $region13
  $region12: #{edge_value_predictor.3} parent=0 // pred_region
    _
  $region13: #{edge_value_predictor.3} parent=0 // pred_fallthru
    _
  // Predicated region
  $region14: #{edge_value_predictor.3} parent=0 // pred_check
    _
  $region15: #{edge_value_predictor.3} parent=0 // pred_check_branch
    %17 = sbr.rel (0) target = $region17
  $region16: #{edge_value_predictor.3} parent=0 // pred_region
    _
  $region17: #{edge_value_predictor.3} parent=0 // pred_fallthru
    _
  // Predicated region
  $region18: #{edge_value_predictor.3} parent=0 // pred_check
    _
  $region19: #{edge_value_predictor.3} parent=0 // pred_check_branch
    %19 = sbr.rel (0) target = $region21
  $region20: #{edge_value_predictor.3} parent=0 // pred_region
    _
  $region21: #{edge_value_predictor.3} parent=0 // pred_fallthru
    _
  %v21 = vld [vmem:[%s2] sm:$0xf]
  %v22 = vld [vmem:[%s2 + $0x4] sm:$0xf]
  %v23 = vld [vmem:[%s2 + $0x8] sm:$0xf]
  %v24 = vld [vmem:[%s2 + $0xc] sm:$0xf]
  %v25 = vlaneseq
  %v26 = vshrl.u32 %v25, 7
  %v27 = vadd.s32 %v26, 8
  %v28 = vadd.s32 %v26, 16
  %v29 = vadd.s32 %v26, 24
  %v30 = vadd.s32 %v26, 32
  %v31 = vadd.s32 %v26, 40
  %v32 = vadd.s32 %v26, 48
  %v33 = vadd.s32 %v26, 56
  %v34 = vadd.s32 %v26, 64
  %v35 = vadd.s32 %v26, 72
  %v36 = vadd.s32 %v26, 80
  %v37 = vadd.s32 %v26, 88
  %v38 = vadd.s32 %v26, 96
  %v39 = vadd.s32 %v26, 104
  %v40 = vadd.s32 %v26, 112
  %v41 = vadd.s32 %v26, 120
  %v42 = vld [vmem:[%s0] sm:$0x1]
  %v43 = vperm.slane %v42, 0
  %vm44 = vcmp.eq.s32.totalorder %v26, %v43
  %vm45 = vcmp.eq.s32.totalorder %v27, %v43
  %vm46 = vcmp.eq.s32.totalorder %v28, %v43
  %vm47 = vcmp.eq.s32.totalorder %v29, %v43
  %vm48 = vcmp.eq.s32.totalorder %v30, %v43
  %vm49 = vcmp.eq.s32.totalorder %v31, %v43
  %vm50 = vcmp.eq.s32.totalorder %v32, %v43
  %vm51 = vcmp.eq.s32.totalorder %v33, %v43
  %vm52 = vcmp.eq.s32.totalorder %v34, %v43
  %vm53 = vcmp.eq.s32.totalorder %v35, %v43
  %vm54 = vcmp.eq.s32.totalorder %v36, %v43
  %vm55 = vcmp.eq.s32.totalorder %v37, %v43
  %vm56 = vcmp.eq.s32.totalorder %v38, %v43
  %vm57 = vcmp.eq.s32.totalorder %v39, %v43
  %vm58 = vcmp.eq.s32.totalorder %v40, %v43
  %vm59 = vcmp.eq.s32.totalorder %v41, %v43
  %v60 = vsel %vm44, 1, 0
  %v61 = vsel %vm45, 1, 0
  %v62 = vsel %vm46, 1, 0
  %v63 = vsel %vm47, 1, 0
  %v64 = vsel %vm48, 1, 0
  %v65 = vsel %vm49, 1, 0
  %v66 = vsel %vm50, 1, 0
  %v67 = vsel %vm51, 1, 0
  %v68 = vsel %vm52, 1, 0
  %v69 = vsel %vm53, 1, 0
  %v70 = vsel %vm54, 1, 0
  %v71 = vsel %vm55, 1, 0
  %v72 = vsel %vm56, 1, 0
  %v73 = vsel %vm57, 1, 0
  %v74 = vsel %vm58, 1, 0
  %v75 = vsel %vm59, 1, 0
  %v76 = vcvt.s32.f32 %v60
  %v77 = vcvt.s32.f32 %v61
  %v78 = vcvt.s32.f32 %v62
  %v79 = vcvt.s32.f32 %v63
  %v80 = vcvt.s32.f32 %v64
  %v81 = vcvt.s32.f32 %v65
  %v82 = vcvt.s32.f32 %v66
  %v83 = vcvt.s32.f32 %v67
  %v84 = vcvt.s32.f32 %v68
  %v85 = vcvt.s32.f32 %v69
  %v86 = vcvt.s32.f32 %v70
  %v87 = vcvt.s32.f32 %v71
  %v88 = vcvt.s32.f32 %v72
  %v89 = vcvt.s32.f32 %v73
  %v90 = vcvt.s32.f32 %v74
  %v91 = vcvt.s32.f32 %v75
  %v92 = vpack.c.bf16 %v77, %v76
  %v93 = vpack.c.bf16 %v79, %v78
  %v94 = vpack.c.bf16 %v81, %v80
  %v95 = vpack.c.bf16 %v83, %v82
  %v96 = vpack.c.bf16 %v85, %v84
  %v97 = vpack.c.bf16 %v87, %v86
  %v98 = vpack.c.bf16 %v89, %v88
  %v99 = vpack.c.bf16 %v91, %v90
  %v100 = vld [vmem:[%s1] sm:$0x1]
  %v101 = vperm.slane %v100, 0
  %vm102 = vcmp.eq.s32.totalorder %v26, %v101
  %vm103 = vcmp.eq.s32.totalorder %v27, %v101
  %vm104 = vcmp.eq.s32.totalorder %v28, %v101
  %vm105 = vcmp.eq.s32.totalorder %v29, %v101
  %vm106 = vcmp.eq.s32.totalorder %v30, %v101
  %vm107 = vcmp.eq.s32.totalorder %v31, %v101
  %vm108 = vcmp.eq.s32.totalorder %v32, %v101
  %vm109 = vcmp.eq.s32.totalorder %v33, %v101
  %vm110 = vcmp.eq.s32.totalorder %v34, %v101
  %vm111 = vcmp.eq.s32.totalorder %v35, %v101
  %vm112 = vcmp.eq.s32.totalorder %v36, %v101
  %vm113 = vcmp.eq.s32.totalorder %v37, %v101
  %vm114 = vcmp.eq.s32.totalorder %v38, %v101
  %vm115 = vcmp.eq.s32.totalorder %v39, %v101
  %vm116 = vcmp.eq.s32.totalorder %v40, %v101
  %vm117 = vcmp.eq.s32.totalorder %v41, %v101
  %v118 = vsel %vm102, 1, 0
  %v119 = vsel %vm103, 1, 0
  %v120 = vsel %vm104, 1, 0
  %v121 = vsel %vm105, 1, 0
  %v122 = vsel %vm106, 1, 0
  %v123 = vsel %vm107, 1, 0
  %v124 = vsel %vm108, 1, 0
  %v125 = vsel %vm109, 1, 0
  %v126 = vsel %vm110, 1, 0
  %v127 = vsel %vm111, 1, 0
  %v128 = vsel %vm112, 1, 0
  %v129 = vsel %vm113, 1, 0
  %v130 = vsel %vm114, 1, 0
  %v131 = vsel %vm115, 1, 0
  %v132 = vsel %vm116, 1, 0
  %v133 = vsel %vm117, 1, 0
  %v134 = vcvt.s32.f32 %v118
  %v135 = vcvt.s32.f32 %v119
  %v136 = vcvt.s32.f32 %v120
  %v137 = vcvt.s32.f32 %v121
  %v138 = vcvt.s32.f32 %v122
  %v139 = vcvt.s32.f32 %v123
  %v140 = vcvt.s32.f32 %v124
  %v141 = vcvt.s32.f32 %v125
  %v142 = vcvt.s32.f32 %v126
  %v143 = vcvt.s32.f32 %v127
  %v144 = vcvt.s32.f32 %v128
  %v145 = vcvt.s32.f32 %v129
  %v146 = vcvt.s32.f32 %v130
  %v147 = vcvt.s32.f32 %v131
  %v148 = vcvt.s32.f32 %v132
  %v149 = vcvt.s32.f32 %v133
  %v150 = vpack.c.bf16 %v135, %v134
  %v151 = vpack.c.bf16 %v137, %v136
  %v152 = vpack.c.bf16 %v139, %v138
  %v153 = vpack.c.bf16 %v141, %v140
  %v154 = vpack.c.bf16 %v143, %v142
  %v155 = vpack.c.bf16 %v145, %v144
  %v156 = vpack.c.bf16 %v147, %v146
  %v157 = vpack.c.bf16 %v149, %v148
  %v162 = vunpack.c.l.b16 %v21
  %v163 = vunpack.c.l.b16 %v22
  %v164 = vunpack.c.l.b16 %v23
  %v165 = vunpack.c.l.b16 %v24
  %v166 = vpack.c.b16 %v163, %v162
  %v167 = vpack.c.b16 %v165, %v164
  %170 = vmatpush.bf16.msra.mxu0 %v99
  %171 = vmatpush.bf16.msra.mxu0 %v98
  %172 = vmatpush.bf16.msra.mxu0 %v97
  %173 = vmatpush.bf16.msra.mxu0 %v96
  %174 = vmatpush.bf16.msra.mxu0 %v95
  %175 = vmatpush.bf16.msra.mxu0 %v94
  %176 = vmatpush.bf16.msra.mxu0 %v93
  %177 = vmatpush.bf16.msra.mxu0 %v92
  %178 = vmatmul.bf16.gmra.mxu0 %v166
  %v179 = vpop.f32.mrf.mxu0
  %v180 = vadd.f32 0.0, %v179
  %v181 = vpop.f32.mrf.mxu0
  %v182 = vadd.f32 0.0, %v181
  %183 = vmatmul.bf16.gmra.mxu0 %v167
  %v184 = vpop.f32.mrf.mxu0
  %v185 = vadd.f32 0.0, %v184
  %v186 = vpop.f32.mrf.mxu0
  %v187 = vadd.f32 0.0, %v186
  %188 = vdwg.mxu0
  %189 = vmatpush.bf16.msra.mxu0 %v157
  %190 = vmatpush.bf16.msra.mxu0 %v156
  %191 = vmatpush.bf16.msra.mxu0 %v155
  %192 = vmatpush.bf16.msra.mxu0 %v154
  %193 = vmatpush.bf16.msra.mxu0 %v153
  %194 = vmatpush.bf16.msra.mxu0 %v152
  %195 = vmatpush.bf16.msra.mxu0 %v151
  %196 = vmatpush.bf16.msra.mxu0 %v150
  %197 = vmatmul.bf16.gmra.mxu0 %v166
  %v198 = vpop.f32.mrf.mxu0
  %v199 = vadd.f32 0.0, %v198
  %v200 = vpop.f32.mrf.mxu0
  %v201 = vadd.f32 0.0, %v200
  %202 = vmatmul.bf16.gmra.mxu0 %v167
  %v203 = vpop.f32.mrf.mxu0
  %v204 = vadd.f32 0.0, %v203
  %v205 = vpop.f32.mrf.mxu0
  %v206 = vadd.f32 0.0, %v205
  %207 = vdwg.mxu0
  %v208 = vpack.c.bf16 %v182, %v180
  %v209 = vpack.c.bf16 %v187, %v185
  %v210 = vpack.c.bf16 %v201, %v199
  %v211 = vpack.c.bf16 %v206, %v204
  %v212 = vld [vmem:[%s3] sm:$0xf]
  %v213 = vld [vmem:[%s3 + $0x4] sm:$0xf]
  %v214 = vld [vmem:[%s3 + $0x8] sm:$0xf]
  %v215 = vld [vmem:[%s3 + $0xc] sm:$0xf]
  %v216 = vld [vmem:[%s3 + $0x10] sm:$0xf]
  %v217 = vld [vmem:[%s3 + $0x14] sm:$0xf]
  %v218 = vld [vmem:[%s3 + $0x18] sm:$0xf]
  %v219 = vld [vmem:[%s3 + $0x1c] sm:$0xf]
  %v220 = vld [vmem:[%s3 + $0x20] sm:$0x1]
  %v221 = vld [vmem:[%s4] sm:$0xff]
  %v222 = vld [vmem:[%s4 + $0x8] sm:$0xff]
  %v223 = vld [vmem:[%s4 + $0x10] sm:$0xff]
  %v224 = vld [vmem:[%s4 + $0x18] sm:$0xff]
  %v225 = vld [vmem:[%s4 + $0x20] sm:$0xff]
  %v226 = vld [vmem:[%s4 + $0x28] sm:$0xff]
  %v227 = vld [vmem:[%s4 + $0x30] sm:$0xff]
  %v228 = vld [vmem:[%s4 + $0x38] sm:$0xff]
  %v229 = vld [vmem:[%s4 + $0x40] sm:$0x3]
  %231 = vset.pattern.permute.xlu0 0
  %232 = vperm.xlu0 %231, %v221
  %v233 = vpop.permute.xlu0 %232
  %236 = vset.pattern.permute.xlu0 0
  %237 = vperm.xlu0 %236, %v222
  %v238 = vpop.permute.xlu0 %237
  %241 = vset.pattern.permute.xlu0 0
  %242 = vperm.xlu0 %241, %v223
  %v243 = vpop.permute.xlu0 %242
  %246 = vset.pattern.permute.xlu0 0
  %247 = vperm.xlu0 %246, %v224
  %v248 = vpop.permute.xlu0 %247
  %251 = vset.pattern.permute.xlu0 0
  %252 = vperm.xlu0 %251, %v225
  %v253 = vpop.permute.xlu0 %252
  %256 = vset.pattern.permute.xlu0 0
  %257 = vperm.xlu0 %256, %v226
  %v258 = vpop.permute.xlu0 %257
  %261 = vset.pattern.permute.xlu0 0
  %262 = vperm.xlu0 %261, %v227
  %v263 = vpop.permute.xlu0 %262
  %266 = vset.pattern.permute.xlu0 0
  %267 = vperm.xlu0 %266, %v228
  %v268 = vpop.permute.xlu0 %267
  %v278 = vunpack.c.l.b16 %v212
  %v279 = vunpack.c.l.b16 %v213
  %v280 = vunpack.c.l.b16 %v214
  %v281 = vunpack.c.l.b16 %v215
  %v282 = vunpack.c.l.b16 %v216
  %v283 = vunpack.c.l.b16 %v217
  %v284 = vunpack.c.l.b16 %v218
  %v285 = vunpack.c.l.b16 %v219
  %v286 = vpack.c.b16 %v279, %v278
  %v287 = vpack.c.b16 %v281, %v280
  %v288 = vpack.c.b16 %v283, %v282
  %v289 = vpack.c.b16 %v285, %v284
  %vm290 = vcmask 523264
  %v292 = vsel %vm290, %v286, 0
  %v295 = vsel %vm290, %v287, 0
  %v298 = vsel %vm290, %v288, 0
  %v301 = vsel %vm290, %v289, 0
  %303 = vmatpush.bf16.msra.mxu0 0
  %304 = vmatpush.bf16.msra.mxu0 0
  %305 = vmatpush.bf16.msra.mxu0 0
  %306 = vmatpush.bf16.msra.mxu0 0
  %307 = vmatpush.bf16.msra.mxu0 %v211
  %308 = vmatpush.bf16.msra.mxu0 %v210
  %309 = vmatpush.bf16.msra.mxu0 %v209
  %310 = vmatpush.bf16.msra.mxu0 %v208
  %311 = vmatmul.bf16.gmra.mxu0 %v292
  %v312 = vpop.f32.mrf.mxu0
  %v313 = vadd.f32 %v233, %v312
  %v314 = vpop.f32.mrf.mxu0
  %v315 = vadd.f32 %v238, %v314
  %316 = vmatmul.bf16.gmra.mxu0 %v295
  %v317 = vpop.f32.mrf.mxu0
  %v318 = vadd.f32 %v243, %v317
  %v319 = vpop.f32.mrf.mxu0
  %v320 = vadd.f32 %v248, %v319
  %321 = vmatmul.bf16.gmra.mxu0 %v298
  %v322 = vpop.f32.mrf.mxu0
  %v323 = vadd.f32 %v253, %v322
  %v324 = vpop.f32.mrf.mxu0
  %v325 = vadd.f32 %v258, %v324
  %326 = vmatmul.bf16.gmra.mxu0 %v301
  %v327 = vpop.f32.mrf.mxu0
  %v328 = vadd.f32 %v263, %v327
  %v329 = vpop.f32.mrf.mxu0
  %v330 = vadd.f32 %v268, %v329
  %331 = vdwg.mxu0
  %v332 = vmax.f32 %v313, 0.0
  %v333 = vmax.f32 %v315, 0.0
  %v334 = vmax.f32 %v318, 0.0
  %v335 = vmax.f32 %v320, 0.0
  %v336 = vmax.f32 %v323, 0.0
  %v337 = vmax.f32 %v325, 0.0
  %v338 = vmax.f32 %v328, 0.0
  %v339 = vmax.f32 %v330, 0.0
  %v340 = vpack.c.bf16 %v333, %v332
  %v341 = vpack.c.bf16 %v335, %v334
  %v342 = vpack.c.bf16 %v337, %v336
  %v343 = vpack.c.bf16 %v339, %v338
  %345 = vset.pattern.permute.xlu0 0
  %346 = vperm.xlu0 %345, %v229
  %v347 = vpop.permute.xlu0 %346
  %v350 = vsel %vm290, %v220, 0
  %352 = vmatpush.bf16.msra.mxu0 0
  %353 = vmatpush.bf16.msra.mxu0 0
  %354 = vmatpush.bf16.msra.mxu0 0
  %355 = vmatpush.bf16.msra.mxu0 0
  %356 = vmatpush.bf16.msra.mxu0 %v343
  %357 = vmatpush.bf16.msra.mxu0 %v342
  %358 = vmatpush.bf16.msra.mxu0 %v341
  %359 = vmatpush.bf16.msra.mxu0 %v340
  %360 = vmatmul.bf16.gmra.mxu0 %v350
  %v361 = vpop.f32.mrf.mxu0
  %v362 = vadd.f32 %v347, %v361
  %v363 = vpop.f32.mrf.mxu0
  %364 = vdwg.mxu0
  %vm365 = vcmp.eq.s32.totalorder %v26, 1
  %v366 = vmul.f32 %v362, 0.5
  %v367 = vmul.f32 %v366, 1.442695
  %v368 = vpow.pop %v367
  %v369 = vsel %vm365, %v368, %v362
  %370 = vst [vmem:[%s5] sm:$0x3] %v369
  // Predicated region
  $region22: #{edge_value_predictor.3} parent=0 // pred_check
    _
  $region23: #{edge_value_predictor.3} parent=0 // pred_check_branch
    %372 = sbr.rel (0) target = $region25
  $region24: #{edge_value_predictor.3} parent=0 // pred_region
    _
  $region25: #{edge_value_predictor.3} parent=0 // pred_fallthru
    _
  // Predicated region
  $region26: #{edge_value_predictor.3} parent=0 // pred_check
    _
  $region27: #{edge_value_predictor.3} parent=0 // pred_check_branch
    %374 = sbr.rel (0) target = $region29
  $region28: #{edge_value_predictor.3} parent=0 // pred_region
    _
  $region29: #{edge_value_predictor.3} parent=0 // pred_fallthru
    _

// kernel: edge_value_predictor.2
$region0: #{edge_value_predictor.2}
  #allocation0 [shape = 'u32[]', space=smem, size = 0x4, offset = 0x4, fixed_abs, tag = 'smem constant byte address 0x4 - core index']
  #allocation1 [shape = 'u32[72,128]{1,0:T(1,128)}', space=vmem, size = 0x9000, scoped, tag = 'internal scratch']
  %s0 = inlined_call_operand.vmem [shape: s32[1,128], index: 0, kind: input, shape index: {}]
  %s1 = inlined_call_operand.vmem [shape: s32[128,1], index: 1, kind: input, shape index: {}]
  %s2 = inlined_call_operand.vmem [shape: f32[8,128], index: 2, kind: input, shape index: {}]
  %s3 = inlined_call_operand.vmem [shape: bf16[32,16], index: 3, kind: input, shape index: {}]
  %s4 = inlined_call_operand.vmem [shape: bf16[32,64], index: 4, kind: input, shape index: {}]
  %s5 = inlined_call_operand.vmem [shape: f32[32,2], index: 5, kind: input, shape index: {}]
  %s6 = inlined_call_operand.vmem [shape: bf16[32,128], index: 6, kind: output, shape index: {}]
  %s7 = sld [smem:[#allocation0]]
  $region34: #{edge_value_predictor.2} parent=0
    _
  %s9 = ssub.s32 1, %s7
  %s10 = scalar_select 0, %s9, %s7
  // Predicated region
  $region2: #{edge_value_predictor.2} parent=0 // pred_check
    _
  $region3: #{edge_value_predictor.2} parent=0 // pred_check_branch
    %12 = sbr.rel (0) target = $region5
  $region4: #{edge_value_predictor.2} parent=0 // pred_region
    _
  $region5: #{edge_value_predictor.2} parent=0 // pred_fallthru
    _
  // Predicated region
  $region6: #{edge_value_predictor.2} parent=0 // pred_check
    _
  $region7: #{edge_value_predictor.2} parent=0 // pred_check_branch
    %14 = sbr.rel (0) target = $region9
  $region8: #{edge_value_predictor.2} parent=0 // pred_region
    _
  $region9: #{edge_value_predictor.2} parent=0 // pred_fallthru
    _
  // Predicated region
  $region10: #{edge_value_predictor.2} parent=0 // pred_check
    _
  $region11: #{edge_value_predictor.2} parent=0 // pred_check_branch
    %16 = sbr.rel (0) target = $region13
  $region12: #{edge_value_predictor.2} parent=0 // pred_region
    _
  $region13: #{edge_value_predictor.2} parent=0 // pred_fallthru
    _
  // Predicated region
  $region14: #{edge_value_predictor.2} parent=0 // pred_check
    _
  $region15: #{edge_value_predictor.2} parent=0 // pred_check_branch
    %18 = sbr.rel (0) target = $region17
  $region16: #{edge_value_predictor.2} parent=0 // pred_region
    _
  $region17: #{edge_value_predictor.2} parent=0 // pred_fallthru
    _
  // Predicated region
  $region18: #{edge_value_predictor.2} parent=0 // pred_check
    _
  $region19: #{edge_value_predictor.2} parent=0 // pred_check_branch
    %20 = sbr.rel (0) target = $region21
  $region20: #{edge_value_predictor.2} parent=0 // pred_region
    _
  $region21: #{edge_value_predictor.2} parent=0 // pred_fallthru
    _
  // Predicated region
  $region22: #{edge_value_predictor.2} parent=0 // pred_check
    _
  $region23: #{edge_value_predictor.2} parent=0 // pred_check_branch
    %22 = sbr.rel (0) target = $region25
  $region24: #{edge_value_predictor.2} parent=0 // pred_region
    _
  $region25: #{edge_value_predictor.2} parent=0 // pred_fallthru
    _
  %v24 = vld [vmem:[%s0] sm:$0x1]
  %v25 = vld [vmem:[%s1] sm:$0xff]
  %v26 = vld [vmem:[%s1 + $0x8] sm:$0xff]
  %v27 = vld [vmem:[%s1 + $0x10] sm:$0xff]
  %v28 = vld [vmem:[%s1 + $0x18] sm:$0xff]
  %v29 = vld [vmem:[%s1 + $0x20] sm:$0xff]
  %v30 = vld [vmem:[%s1 + $0x28] sm:$0xff]
  %v31 = vld [vmem:[%s1 + $0x30] sm:$0xff]
  %v32 = vld [vmem:[%s1 + $0x38] sm:$0xff]
  %v33 = vld [vmem:[%s1 + $0x40] sm:$0xff]
  %v34 = vld [vmem:[%s1 + $0x48] sm:$0xff]
  %v35 = vld [vmem:[%s1 + $0x50] sm:$0xff]
  %v36 = vld [vmem:[%s1 + $0x58] sm:$0xff]
  %v37 = vld [vmem:[%s1 + $0x60] sm:$0xff]
  %v38 = vld [vmem:[%s1 + $0x68] sm:$0xff]
  %v39 = vld [vmem:[%s1 + $0x70] sm:$0xff]
  %v40 = vld [vmem:[%s1 + $0x78] sm:$0xff]
  %v41 = vlaneseq
  %v42 = vshrl.u32 %v41, 7
  %v43 = vadd.s32 %v42, 8
  %v44 = vadd.s32 %v42, 16
  %v45 = vadd.s32 %v42, 24
  %v46 = vadd.s32 %v42, 32
  %v47 = vadd.s32 %v42, 40
  %v48 = vadd.s32 %v42, 48
  %v49 = vadd.s32 %v42, 56
  %v50 = vadd.s32 %v42, 64
  %v51 = vadd.s32 %v42, 72
  %v52 = vadd.s32 %v42, 80
  %v53 = vadd.s32 %v42, 88
  %v54 = vadd.s32 %v42, 96
  %v55 = vadd.s32 %v42, 104
  %v56 = vadd.s32 %v42, 112
  %v57 = vadd.s32 %v42, 120
  %v58 = vperm.slane %v24, 0
  %vm59 = vcmp.eq.s32.totalorder %v42, %v58
  %vm60 = vcmp.eq.s32.totalorder %v43, %v58
  %vm61 = vcmp.eq.s32.totalorder %v44, %v58
  %vm62 = vcmp.eq.s32.totalorder %v45, %v58
  %vm63 = vcmp.eq.s32.totalorder %v46, %v58
  %vm64 = vcmp.eq.s32.totalorder %v47, %v58
  %vm65 = vcmp.eq.s32.totalorder %v48, %v58
  %vm66 = vcmp.eq.s32.totalorder %v49, %v58
  %vm67 = vcmp.eq.s32.totalorder %v50, %v58
  %vm68 = vcmp.eq.s32.totalorder %v51, %v58
  %vm69 = vcmp.eq.s32.totalorder %v52, %v58
  %vm70 = vcmp.eq.s32.totalorder %v53, %v58
  %vm71 = vcmp.eq.s32.totalorder %v54, %v58
  %vm72 = vcmp.eq.s32.totalorder %v55, %v58
  %vm73 = vcmp.eq.s32.totalorder %v56, %v58
  %vm74 = vcmp.eq.s32.totalorder %v57, %v58
  %v75 = vsel %vm59, 1, 0
  %v76 = vsel %vm60, 1, 0
  %v77 = vsel %vm61, 1, 0
  %v78 = vsel %vm62, 1, 0
  %v79 = vsel %vm63, 1, 0
  %v80 = vsel %vm64, 1, 0
  %v81 = vsel %vm65, 1, 0
  %v82 = vsel %vm66, 1, 0
  %v83 = vsel %vm67, 1, 0
  %v84 = vsel %vm68, 1, 0
  %v85 = vsel %vm69, 1, 0
  %v86 = vsel %vm70, 1, 0
  %v87 = vsel %vm71, 1, 0
  %v88 = vsel %vm72, 1, 0
  %v89 = vsel %vm73, 1, 0
  %v90 = vsel %vm74, 1, 0
  %v91 = vcvt.s32.f32 %v75
  %v92 = vcvt.s32.f32 %v76
  %v93 = vcvt.s32.f32 %v77
  %v94 = vcvt.s32.f32 %v78
  %v95 = vcvt.s32.f32 %v79
  %v96 = vcvt.s32.f32 %v80
  %v97 = vcvt.s32.f32 %v81
  %v98 = vcvt.s32.f32 %v82
  %v99 = vcvt.s32.f32 %v83
  %v100 = vcvt.s32.f32 %v84
  %v101 = vcvt.s32.f32 %v85
  %v102 = vcvt.s32.f32 %v86
  %v103 = vcvt.s32.f32 %v87
  %v104 = vcvt.s32.f32 %v88
  %v105 = vcvt.s32.f32 %v89
  %v106 = vcvt.s32.f32 %v90
  %v107 = vpack.c.bf16 %v92, %v91
  %v108 = vpack.c.bf16 %v94, %v93
  %v109 = vpack.c.bf16 %v96, %v95
  %v110 = vpack.c.bf16 %v98, %v97
  %v111 = vpack.c.bf16 %v100, %v99
  %v112 = vpack.c.bf16 %v102, %v101
  %v113 = vpack.c.bf16 %v104, %v103
  %v114 = vpack.c.bf16 %v106, %v105
  %v115 = vlaneseq
  %v116 = vand.u32 %v115, 127
  %117 = vset.pattern.permute.xlu0 0
  %118 = vperm.xlu0 %117, %v25
  %v119 = vpop.permute.xlu0 %118
  %120 = vset.pattern.permute.xlu0 0
  %121 = vperm.xlu0 %120, %v26
  %v122 = vpop.permute.xlu0 %121
  %123 = vset.pattern.permute.xlu0 0
  %124 = vperm.xlu0 %123, %v27
  %v125 = vpop.permute.xlu0 %124
  %126 = vset.pattern.permute.xlu0 0
  %127 = vperm.xlu0 %126, %v28
  %v128 = vpop.permute.xlu0 %127
  %129 = vset.pattern.permute.xlu0 0
  %130 = vperm.xlu0 %129, %v29
  %v131 = vpop.permute.xlu0 %130
  %132 = vset.pattern.permute.xlu0 0
  %133 = vperm.xlu0 %132, %v30
  %v134 = vpop.permute.xlu0 %133
  %135 = vset.pattern.permute.xlu0 0
  %136 = vperm.xlu0 %135, %v31
  %v137 = vpop.permute.xlu0 %136
  %138 = vset.pattern.permute.xlu0 0
  %139 = vperm.xlu0 %138, %v32
  %v140 = vpop.permute.xlu0 %139
  %141 = vset.pattern.permute.xlu0 0
  %142 = vperm.xlu0 %141, %v33
  %v143 = vpop.permute.xlu0 %142
  %144 = vset.pattern.permute.xlu0 0
  %145 = vperm.xlu0 %144, %v34
  %v146 = vpop.permute.xlu0 %145
  %147 = vset.pattern.permute.xlu0 0
  %148 = vperm.xlu0 %147, %v35
  %v149 = vpop.permute.xlu0 %148
  %150 = vset.pattern.permute.xlu0 0
  %151 = vperm.xlu0 %150, %v36
  %v152 = vpop.permute.xlu0 %151
  %153 = vset.pattern.permute.xlu0 0
  %154 = vperm.xlu0 %153, %v37
  %v155 = vpop.permute.xlu0 %154
  %156 = vset.pattern.permute.xlu0 0
  %157 = vperm.xlu0 %156, %v38
  %v158 = vpop.permute.xlu0 %157
  %159 = vset.pattern.permute.xlu0 0
  %160 = vperm.xlu0 %159, %v39
  %v161 = vpop.permute.xlu0 %160
  %162 = vset.pattern.permute.xlu0 0
  %163 = vperm.xlu0 %162, %v40
  %v164 = vpop.permute.xlu0 %163
  %vm165 = vcmp.eq.s32.totalorder %v116, %v119
  %vm166 = vcmp.eq.s32.totalorder %v116, %v122
  %vm167 = vcmp.eq.s32.totalorder %v116, %v125
  %vm168 = vcmp.eq.s32.totalorder %v116, %v128
  %vm169 = vcmp.eq.s32.totalorder %v116, %v131
  %vm170 = vcmp.eq.s32.totalorder %v116, %v134
  %vm171 = vcmp.eq.s32.totalorder %v116, %v137
  %vm172 = vcmp.eq.s32.totalorder %v116, %v140
  %vm173 = vcmp.eq.s32.totalorder %v116, %v143
  %vm174 = vcmp.eq.s32.totalorder %v116, %v146
  %vm175 = vcmp.eq.s32.totalorder %v116, %v149
  %vm176 = vcmp.eq.s32.totalorder %v116, %v152
  %vm177 = vcmp.eq.s32.totalorder %v116, %v155
  %vm178 = vcmp.eq.s32.totalorder %v116, %v158
  %vm179 = vcmp.eq.s32.totalorder %v116, %v161
  %vm180 = vcmp.eq.s32.totalorder %v116, %v164
  %v181 = vsel %vm165, 1, 0
  %v182 = vsel %vm166, 1, 0
  %v183 = vsel %vm167, 1, 0
  %v184 = vsel %vm168, 1, 0
  %v185 = vsel %vm169, 1, 0
  %v186 = vsel %vm170, 1, 0
  %v187 = vsel %vm171, 1, 0
  %v188 = vsel %vm172, 1, 0
  %v189 = vsel %vm173, 1, 0
  %v190 = vsel %vm174, 1, 0
  %v191 = vsel %vm175, 1, 0
  %v192 = vsel %vm176, 1, 0
  %v193 = vsel %vm177, 1, 0
  %v194 = vsel %vm178, 1, 0
  %v195 = vsel %vm179, 1, 0
  %v196 = vsel %vm180, 1, 0
  %v197 = vcvt.s32.f32 %v181
  %v198 = vcvt.s32.f32 %v182
  %v199 = vcvt.s32.f32 %v183
  %v200 = vcvt.s32.f32 %v184
  %v201 = vcvt.s32.f32 %v185
  %v202 = vcvt.s32.f32 %v186
  %v203 = vcvt.s32.f32 %v187
  %v204 = vcvt.s32.f32 %v188
  %v205 = vcvt.s32.f32 %v189
  %v206 = vcvt.s32.f32 %v190
  %v207 = vcvt.s32.f32 %v191
  %v208 = vcvt.s32.f32 %v192
  %v209 = vcvt.s32.f32 %v193
  %v210 = vcvt.s32.f32 %v194
  %v211 = vcvt.s32.f32 %v195
  %v212 = vcvt.s32.f32 %v196
  %v213 = vpack.c.bf16 %v198, %v197
  %v214 = vpack.c.bf16 %v200, %v199
  %v215 = vpack.c.bf16 %v202, %v201
  %v216 = vpack.c.bf16 %v204, %v203
  %v217 = vpack.c.bf16 %v206, %v205
  %v218 = vpack.c.bf16 %v208, %v207
  %v219 = vpack.c.bf16 %v210, %v209
  %v220 = vpack.c.bf16 %v212, %v211
  %221 = vmatpush.bf16.msra.mxu0 %v220
  %222 = vmatpush.bf16.msra.mxu0 %v219
  %223 = vmatpush.bf16.msra.mxu0 %v218
  %224 = vmatpush.bf16.msra.mxu0 %v217
  %225 = vmatpush.bf16.msra.mxu0 %v216
  %226 = vmatpush.bf16.msra.mxu0 %v215
  %227 = vmatpush.bf16.msra.mxu0 %v214
  %228 = vmatpush.bf16.msra.mxu0 %v213
  %229 = vmatmul.bf16.gmra.mxu0 %v107
  %v230 = vpop.f32.mrf.mxu0
  %v231 = vadd.f32 0.0, %v230
  %v232 = vpop.f32.mrf.mxu0
  %v233 = vadd.f32 0.0, %v232
  %234 = vmatmul.bf16.gmra.mxu0 %v108
  %v235 = vpop.f32.mrf.mxu0
  %v236 = vadd.f32 0.0, %v235
  %v237 = vpop.f32.mrf.mxu0
  %v238 = vadd.f32 0.0, %v237
  %239 = vmatmul.bf16.gmra.mxu0 %v109
  %v240 = vpop.f32.mrf.mxu0
  %v241 = vadd.f32 0.0, %v240
  %v242 = vpop.f32.mrf.mxu0
  %v243 = vadd.f32 0.0, %v242
  %244 = vmatmul.bf16.gmra.mxu0 %v110
  %v245 = vpop.f32.mrf.mxu0
  %v246 = vadd.f32 0.0, %v245
  %v247 = vpop.f32.mrf.mxu0
  %v248 = vadd.f32 0.0, %v247
  %249 = vmatmul.bf16.gmra.mxu0 %v111
  %v250 = vpop.f32.mrf.mxu0
  %v251 = vadd.f32 0.0, %v250
  %v252 = vpop.f32.mrf.mxu0
  %v253 = vadd.f32 0.0, %v252
  %254 = vmatmul.bf16.gmra.mxu0 %v112
  %v255 = vpop.f32.mrf.mxu0
  %v256 = vadd.f32 0.0, %v255
  %v257 = vpop.f32.mrf.mxu0
  %v258 = vadd.f32 0.0, %v257
  %259 = vmatmul.bf16.gmra.mxu0 %v113
  %v260 = vpop.f32.mrf.mxu0
  %v261 = vadd.f32 0.0, %v260
  %v262 = vpop.f32.mrf.mxu0
  %v263 = vadd.f32 0.0, %v262
  %264 = vmatmul.bf16.gmra.mxu0 %v114
  %v265 = vpop.f32.mrf.mxu0
  %v266 = vadd.f32 0.0, %v265
  %v267 = vpop.f32.mrf.mxu0
  %v268 = vadd.f32 0.0, %v267
  %269 = vdwg.mxu0
  %v270 = vpack.c.bf16 %v233, %v231
  %v271 = vpack.c.bf16 %v238, %v236
  %v272 = vpack.c.bf16 %v243, %v241
  %v273 = vpack.c.bf16 %v248, %v246
  %v274 = vpack.c.bf16 %v253, %v251
  %v275 = vpack.c.bf16 %v258, %v256
  %v276 = vpack.c.bf16 %v263, %v261
  %v277 = vpack.c.bf16 %v268, %v266
  %v278 = vld [vmem:[%s2] sm:$0xff]
  %v279 = vpack.c.bf16 %v278, %v278
  %280 = vmatpush.bf16.msra.mxu0 %v277
  %281 = vmatpush.bf16.msra.mxu0 %v276
  %282 = vmatpush.bf16.msra.mxu0 %v275
  %283 = vmatpush.bf16.msra.mxu0 %v274
  %284 = vmatpush.bf16.msra.mxu0 %v273
  %285 = vmatpush.bf16.msra.mxu0 %v272
  %286 = vmatpush.bf16.msra.mxu0 %v271
  %287 = vmatpush.bf16.msra.mxu0 %v270
  %288 = vmatmul.bf16.gmra.mxu0 %v279
  %v289 = vpop.f32.mrf.mxu0
  %v290 = vadd.f32 0.0, %v289
  %v291 = vpop.f32.mrf.mxu0
  %292 = vdwg.mxu0
  %v293 = vpack.c.bf16 %v278, %v290
  %v294 = vld [vmem:[%s3] sm:$0xf]
  %v295 = vld [vmem:[%s3 + $0x4] sm:$0xf]
  %v296 = vld [vmem:[%s3 + $0x8] sm:$0xf]
  %v297 = vld [vmem:[%s3 + $0xc] sm:$0xf]
  %v298 = vld [vmem:[%s5] sm:$0xff]
  %v299 = vld [vmem:[%s5 + $0x8] sm:$0xff]
  %v300 = vld [vmem:[%s5 + $0x10] sm:$0xff]
  %v301 = vld [vmem:[%s5 + $0x18] sm:$0xff]
  %303 = vset.pattern.permute.xlu0 0
  %304 = vperm.xlu0 %303, %v298
  %v305 = vpop.permute.xlu0 %304
  %308 = vset.pattern.permute.xlu0 0
  %309 = vperm.xlu0 %308, %v299
  %v310 = vpop.permute.xlu0 %309
  %313 = vset.pattern.permute.xlu0 0
  %314 = vperm.xlu0 %313, %v300
  %v315 = vpop.permute.xlu0 %314
  %318 = vset.pattern.permute.xlu0 0
  %319 = vperm.xlu0 %318, %v301
  %v320 = vpop.permute.xlu0 %319
  %v326 = vunpack.c.l.b16 %v294
  %v327 = vunpack.c.l.b16 %v295
  %v328 = vunpack.c.l.b16 %v296
  %v329 = vunpack.c.l.b16 %v297
  %v330 = vpack.c.b16 %v327, %v326
  %v331 = vpack.c.b16 %v329, %v328
  %vm332 = vcmask 130048
  %v334 = vsel %vm332, %v330, 0
  %v337 = vsel %vm332, %v331, 0
  %339 = vmatpush.bf16.msra.mxu0 0
  %340 = vmatpush.bf16.msra.mxu0 0
  %341 = vmatpush.bf16.msra.mxu0 0
  %342 = vmatpush.bf16.msra.mxu0 0
  %343 = vmatpush.bf16.msra.mxu0 0
  %344 = vmatpush.bf16.msra.mxu0 0
  %345 = vmatpush.bf16.msra.mxu0 0
  %346 = vmatpush.bf16.msra.mxu0 %v293
  %347 = vmatmul.bf16.gmra.mxu0 %v334
  %v348 = vpop.f32.mrf.mxu0
  %v349 = vadd.f32 %v305, %v348
  %v350 = vpop.f32.mrf.mxu0
  %v351 = vadd.f32 %v310, %v350
  %352 = vmatmul.bf16.gmra.mxu0 %v337
  %v353 = vpop.f32.mrf.mxu0
  %v354 = vadd.f32 %v315, %v353
  %v355 = vpop.f32.mrf.mxu0
  %v356 = vadd.f32 %v320, %v355
  %357 = vdwg.mxu0
  %v358 = vmax.f32 %v349, 0.0
  %v359 = vmax.f32 %v351, 0.0
  %v360 = vmax.f32 %v354, 0.0
  %v361 = vmax.f32 %v356, 0.0
  %v362 = vpack.c.bf16 %v359, %v358
  %v363 = vpack.c.bf16 %v361, %v360
  %364 = vmatpush.bf16.msra.mxu0 %v277
  %365 = vmatpush.bf16.msra.mxu0 %v276
  %366 = vmatpush.bf16.msra.mxu0 %v275
  %367 = vmatpush.bf16.msra.mxu0 %v274
  %368 = vmatpush.bf16.msra.mxu0 %v273
  %369 = vmatpush.bf16.msra.mxu0 %v272
  %370 = vmatpush.bf16.msra.mxu0 %v271
  %371 = vmatpush.bf16.msra.mxu0 %v270
  %372 = vmatmul.bf16.gmra.mxu0 %v362
  %v373 = vpop.f32.mrf.mxu0
  %v374 = vadd.f32 0.0, %v373
  %v375 = vpop.f32.mrf.mxu0
  %v376 = vadd.f32 0.0, %v375
  %377 = vmatmul.bf16.gmra.mxu0 %v363
  %v378 = vpop.f32.mrf.mxu0
  %v379 = vadd.f32 0.0, %v378
  %v380 = vpop.f32.mrf.mxu0
  %v381 = vadd.f32 0.0, %v380
  %382 = vdwg.mxu0
  %v383 = vpack.c.bf16 %v376, %v374
  %v384 = vpack.c.bf16 %v381, %v379
  %v385 = vld [vmem:[%s4] sm:$0xf]
  %v386 = vld [vmem:[%s4 + $0x4] sm:$0xf]
  %v387 = vld [vmem:[%s4 + $0x8] sm:$0xf]
  %v388 = vld [vmem:[%s4 + $0xc] sm:$0xf]
  %389 = vset.pattern.permute.xlu0 1
  %390 = vperm.xlu0 %389, %v298
  %v391 = vpop.permute.xlu0 %390
  %393 = vset.pattern.permute.xlu0 1
  %394 = vperm.xlu0 %393, %v299
  %v395 = vpop.permute.xlu0 %394
  %397 = vset.pattern.permute.xlu0 1
  %398 = vperm.xlu0 %397, %v300
  %v399 = vpop.permute.xlu0 %398
  %401 = vset.pattern.permute.xlu0 1
  %402 = vperm.xlu0 %401, %v301
  %v403 = vpop.permute.xlu0 %402
  %v409 = vunpack.c.l.b16 %v385
  %v410 = vunpack.c.l.b16 %v386
  %v411 = vunpack.c.l.b16 %v387
  %v412 = vunpack.c.l.b16 %v388
  %v413 = vpack.c.b16 %v410, %v409
  %v414 = vpack.c.b16 %v412, %v411
  %vm415 = vcmask 523264
  %v417 = vsel %vm415, %v413, 0
  %v420 = vsel %vm415, %v414, 0
  %422 = vmatpush.bf16.msra.mxu0 0
  %423 = vmatpush.bf16.msra.mxu0 0
  %424 = vmatpush.bf16.msra.mxu0 0
  %425 = vmatpush.bf16.msra.mxu0 0
  %426 = vmatpush.bf16.msra.mxu0 %v363
  %427 = vmatpush.bf16.msra.mxu0 %v362
  %428 = vmatpush.bf16.msra.mxu0 %v384
  %429 = vmatpush.bf16.msra.mxu0 %v383
  %430 = vmatmul.bf16.gmra.mxu0 %v417
  %v431 = vpop.f32.mrf.mxu0
  %v432 = vadd.f32 %v391, %v431
  %v433 = vpop.f32.mrf.mxu0
  %v434 = vadd.f32 %v395, %v433
  %435 = vmatmul.bf16.gmra.mxu0 %v420
  %v436 = vpop.f32.mrf.mxu0
  %v437 = vadd.f32 %v399, %v436
  %v438 = vpop.f32.mrf.mxu0
  %v439 = vadd.f32 %v403, %v438
  %440 = vdwg.mxu0
  %v441 = vmax.f32 %v432, 0.0
  %v442 = vmax.f32 %v434, 0.0
  %v443 = vmax.f32 %v437, 0.0
  %v444 = vmax.f32 %v439, 0.0
  %v445 = vpack.c.bf16 %v441, %v441
  %v446 = vpack.c.bf16 %v442, %v442
  %v447 = vpack.c.bf16 %v443, %v443
  %v448 = vpack.c.bf16 %v444, %v444
  %449 = vst [vmem:[%s6] sm:$0xf] %v445
  %450 = vst [vmem:[%s6 + $0x4] sm:$0xf] %v446
  %451 = vst [vmem:[%s6 + $0x8] sm:$0xf] %v447
  %452 = vst [vmem:[%s6 + $0xc] sm:$0xf] %v448
  // Predicated region
  $region26: #{edge_value_predictor.2} parent=0 // pred_check
    _
  $region27: #{edge_value_predictor.2} parent=0 // pred_check_branch
    %454 = sbr.rel (0) target = $region29
  $region28: #{edge_value_predictor.2} parent=0 // pred_region
    _
  $region29: #{edge_value_predictor.2} parent=0 // pred_fallthru
    _
  // Predicated region
  $region30: #{edge_value_predictor.2} parent=0 // pred_check
    _
  $region31: #{edge_value_predictor.2} parent=0 // pred_check_branch
    %456 = sbr.rel (0) target = $region33
  $region32: #{edge_value_predictor.2} parent=0 // pred_region
    _
  $region33: #{edge_value_predictor.2} parent=0 // pred_fallthru
    _

</llo_original>
